<compile_context>
chip_gen: v5e
topology: v5e:2x2
jax: 0.10.0
libtpu: 0.0.40
codegen_flags: <defaults>
</compile_context>

<pallas_src>
import functools

import jax
import jax.numpy as jnp
from jax.experimental import pallas as pl
from jax.experimental.pallas import tpu as pltpu

_VMEM_LIMIT = 48 * 1024 * 1024   # raise scoped-VMEM cap (16 MiB default on v5e)
_MAX_ROW_TILE = 512              # row tile for the per-voxel linear kernels


# --------------------------- per-voxel linear kernel -------------------------

def _linear_kernel(x_ref, w_ref, b_ref, o_ref, *, ln, eps, act):
    x = x_ref[...].astype(jnp.float32)
    if ln:                                           # fused no-affine LayerNorm
        mean = jnp.mean(x, axis=-1, keepdims=True)
        xc = x - mean
        var = jnp.mean(xc * xc, axis=-1, keepdims=True)
        x = xc * jax.lax.rsqrt(var + eps)
    y = jnp.dot(x.astype(jnp.bfloat16), w_ref[...],
                preferred_element_type=jnp.float32) + b_ref[...]
    if act == "tanh":
        y = jnp.tanh(y)
    o_ref[...] = y.astype(o_ref.dtype)


def pallas_linear(x, w, b, *, ln=False, ln_eps=1e-5, act=None):
    """y = act((LN?)(x) @ w + b).  x: [N, Cin], w: [Cin, Cout], b: [Cout]."""
    x = x.astype(jnp.float32)
    n, cin = x.shape
    cout = w.shape[-1]
    tile = _MAX_ROW_TILE if n >= _MAX_ROW_TILE else ((n + 7) // 8) * 8
    pad = (-n) % tile
    if pad:
        x = jnp.pad(x, ((0, pad), (0, 0)))
    np_ = x.shape[0]
    out = pl.pallas_call(
        functools.partial(_linear_kernel, ln=ln, eps=ln_eps, act=act),
        out_shape=jax.ShapeDtypeStruct((np_, cout), jnp.float32),
        grid=(np_ // tile,),
        in_specs=[
            pl.BlockSpec((tile, cin), lambda i: (i, 0)),
            pl.BlockSpec((cin, cout), lambda i: (0, 0)),
            pl.BlockSpec((1, cout), lambda i: (0, 0)),
        ],
        out_specs=pl.BlockSpec((tile, cout), lambda i: (i, 0)),
        compiler_params=pltpu.CompilerParams(
            dimension_semantics=("parallel",),
            vmem_limit_bytes=_VMEM_LIMIT),
    )(x, w.astype(jnp.bfloat16), b.reshape(1, cout).astype(jnp.float32))
    return out[:n]


# -------------------- fused LayerNorm + SiLU + 3x3x3 conv --------------------
#
# Activations are carried in a "padded-flat" layout: zero-pad D/H/W by 1, flatten
# each (H+2, W+2) plane to RP = (H+2)*(W+2) rows (+8 zero tail rows so the largest
# tap window stays in-bounds).  Output voxel (h, w) lives at anchor row h*(W+2)+w;
# tap (kd, kh, kw) is then plane (d+kd) shifted down by kh*(W+2)+kw rows.

def _pad_flat(x):
    """[B, D, H, W, C] -> padded-flat [B, D+2, (H+2)*(W+2)+8, C] (f32)."""
    B, D, H, W, C = x.shape
    rp = (H + 2) * (W + 2)
    xp = jnp.pad(x.astype(jnp.float32),
                 ((0, 0), (1, 1), (1, 1), (1, 1), (0, 0))).reshape(B, D + 2, rp, C)
    return jnp.pad(xp, ((0, 0), (0, 0), (0, 8), (0, 0)))


def _conv_kernel(*refs, eps, H, W, skip_mode):
    if skip_mode == "none":
        x_ref, m_ref, w_ref, b_ref, g_ref, be_ref, o_ref, y_sc = refs
        s_ref = sw_ref = sb_ref = None
    elif skip_mode == "identity":
        x_ref, m_ref, w_ref, b_ref, g_ref, be_ref, s_ref, o_ref, y_sc = refs
        sw_ref = sb_ref = None
    else:  # "linear"
        (x_ref, m_ref, w_ref, b_ref, g_ref, be_ref, s_ref, sw_ref, sb_ref,
         o_ref, y_sc) = refs

    d = pl.program_id(1)
    kd = pl.program_id(2)
    nd = pl.num_programs(1)
    Wp = W + 2
    A = H * Wp
    cout = o_ref.shape[-1]

    # first tap-plane: seed the resident output block with the conv bias
    @pl.when(kd == 0)
    def _init():
        o_ref[...] = jnp.zeros_like(o_ref) + b_ref[...]

    # zero-padded D planes (only d==0,kd==0 and d==D-1,kd==2) contribute nothing
    plane_valid = jnp.logical_and(d + kd >= 1, d + kd <= nd)

    @pl.when(plane_valid)
    def _accumulate():
        x = x_ref[...].astype(jnp.float32)                  # [RPP, Cin]
        mean = jnp.mean(x, axis=-1, keepdims=True)
        xc = x - mean
        var = jnp.mean(xc * xc, axis=-1, keepdims=True)
        y = xc * jax.lax.rsqrt(var + eps)
        y = y * g_ref[...] + be_ref[...]                    # affine (or identity)
        y = y * jax.nn.sigmoid(y)                           # SiLU
        y = y * m_ref[...]                                  # re-zero spatial halo
        y_sc[...] = y
        acc = jnp.zeros((A, cout), jnp.float32)
        for kh in range(3):                                 # 9 in-plane taps: row shifts
            for kw in range(3):
                off = kh * Wp + kw
                tap = y_sc[pl.ds(off, A), :].astype(jnp.bfloat16)
                acc = acc + jnp.dot(tap, w_ref[kh * 3 + kw],
                                    preferred_element_type=jnp.float32)
        o_ref[...] = o_ref[...] + acc

    # last tap-plane: fuse the residual / skip-connection into the same kernel
    if skip_mode != "none":
        @pl.when(kd == 2)
        def _finalize():
            s = s_ref[pl.ds(W + 3, A), :]                   # centre-plane source voxels
            if skip_mode == "identity":
                o_ref[...] = o_ref[...] + s.astype(jnp.float32)
            else:
                o_ref[...] = (o_ref[...] + sb_ref[...] +
                              jnp.dot(s.astype(jnp.bfloat16), sw_ref[...],
                                      preferred_element_type=jnp.float32))


def fused_ln_silu_conv3d(xf, dims, w, b, *, gamma=None, beta=None, eps=1e-6,
                         skip_f=None, skip_w=None, skip_b=None):
    """out = conv3x3x3(SiLU(LayerNorm(x))) + b  [+ skip (@ skip_w + skip_b)].

    xf / skip_f are padded-flat tensors from _pad_flat.  Returns compact
    [B, D, H, W, Cout].
    """
    B, D, H, W = dims
    Wp = W + 2
    rpp = (H + 2) * Wp + 8
    A = H * Wp
    cin = xf.shape[-1]
    cout = w.shape[-1]

    rows = jnp.arange(rpp)
    hq, wq = rows // Wp, rows % Wp
    mask = ((hq >= 1) & (hq <= H) & (wq >= 1) & (wq <= W)).astype(jnp.float32)
    mask = mask.reshape(rpp, 1)

    g = gamma if gamma is not None else jnp.ones((cin,), jnp.float32)
    be = beta if beta is not None else jnp.zeros((cin,), jnp.float32)

    inputs = [
        xf,
        mask,
        w.reshape(3, 9, cin, cout).astype(jnp.bfloat16),
        b.reshape(1, cout).astype(jnp.float32),
        g.reshape(1, cin).astype(jnp.float32),
        be.reshape(1, cin).astype(jnp.float32),
    ]
    in_specs = [
        pl.BlockSpec((None, None, rpp, cin), lambda bi, di, kd: (bi, di + kd, 0, 0)),
        pl.BlockSpec((rpp, 1), lambda bi, di, kd: (0, 0)),
        pl.BlockSpec((None, 9, cin, cout), lambda bi, di, kd: (kd, 0, 0, 0)),
        pl.BlockSpec((1, cout), lambda bi, di, kd: (0, 0)),
        pl.BlockSpec((1, cin), lambda bi, di, kd: (0, 0)),
        pl.BlockSpec((1, cin), lambda bi, di, kd: (0, 0)),
    ]

    if skip_f is None:
        skip_mode = "none"
    else:
        cs = skip_f.shape[-1]
        inputs.append(skip_f)
        in_specs.append(pl.BlockSpec((None, None, rpp, cs),
                                     lambda bi, di, kd: (bi, di + 1, 0, 0)))
        if skip_w is None:
            skip_mode = "identity"
        else:
            skip_mode = "linear"
            inputs.append(skip_w.astype(jnp.bfloat16))
            inputs.append(skip_b.reshape(1, cout).astype(jnp.float32))
            in_specs.append(pl.BlockSpec((cs, cout), lambda bi, di, kd: (0, 0)))
            in_specs.append(pl.BlockSpec((1, cout), lambda bi, di, kd: (0, 0)))

    out = pl.pallas_call(
        functools.partial(_conv_kernel, eps=eps, H=H, W=W, skip_mode=skip_mode),
        out_shape=jax.ShapeDtypeStruct((B, D, A, cout), jnp.float32),
        grid=(B, D, 3),
        in_specs=in_specs,
        out_specs=pl.BlockSpec((None, None, A, cout), lambda bi, di, kd: (bi, di, 0, 0)),
        scratch_shapes=[pltpu.VMEM((rpp, cin), jnp.float32)],
        compiler_params=pltpu.CompilerParams(
            dimension_semantics=("parallel", "parallel", "arbitrary"),
            vmem_limit_bytes=_VMEM_LIMIT),
    )(*inputs)
    # drop the in-plane padding columns -> compact [B, D, H, W, Cout]
    return out.reshape(B, D, H, Wp, cout)[:, :, :, :W, :]


# ------------------------------ resampling glue ------------------------------

def avg_pool2(x):   # sp.SparseDownsample(2) on a dense grid
    B, D, H, W, C = x.shape
    return x.reshape(B, D // 2, 2, H // 2, 2, W // 2, 2, C).mean(axis=(2, 4, 6))


def upsample2(x):   # sp.SparseUpsample(2): single broadcast, no repeated HBM copies
    B, D, H, W, C = x.shape
    y = jnp.broadcast_to(x[:, :, None, :, None, :, None, :],
                         (B, D, 2, H, 2, W, 2, C))
    return y.reshape(B, 2 * D, 2 * H, 2 * W, C)


# ------------------------------ SparseResConv3d -----------------------------

def sparse_res_conv3d(x, p, downsample=False, upsample=False):
    if downsample:
        x = avg_pool2(x)
    if upsample:
        x = upsample2(x)
    B, D, H, W, _ = x.shape
    xf = _pad_flat(x)          # shared: conv1 input AND conv2's fused skip source
    # norm1 (affine, eps=1e-6) + SiLU + conv1, one kernel
    h1 = fused_ln_silu_conv3d(xf, (B, D, H, W), p["conv1_w"], p["conv1_b"],
                              gamma=p["norm1_g"], beta=p["norm1_b"], eps=1e-6)
    # norm2 (no affine, eps=1e-6) + SiLU + conv2 + residual/skip, one kernel
    out = fused_ln_silu_conv3d(_pad_flat(h1), (B, D, H, W),
                               p["conv2_w"], p["conv2_b"],
                               gamma=None, beta=None, eps=1e-6,
                               skip_f=xf, skip_w=p.get("skip_w"),
                               skip_b=p.get("skip_b"))
    return out


# ------------------------------ parameter init ------------------------------

def _init_linear(key, cin, cout):
    lim = (1.0 / cin) ** 0.5
    w = jax.random.uniform(key, (cin, cout), jnp.float32, -lim, lim)
    b = jnp.zeros((cout,), jnp.float32)
    return w, b


def _init_resblock(key, cin, cout):
    ks = jax.random.split(key, 2)
    p = {
        "norm1_g": jnp.ones((cin,), jnp.float32),
        "norm1_b": jnp.zeros((cin,), jnp.float32),
        "conv1_w": jax.random.normal(ks[0], (3, 3, 3, cin, cout), jnp.float32)
                   * (1.0 / (27 * cin)) ** 0.5,
        "conv1_b": jnp.zeros((cout,), jnp.float32),
        "conv2_w": jnp.zeros((3, 3, 3, cout, cout), jnp.float32),  # zero_module(conv2)
        "conv2_b": jnp.zeros((cout,), jnp.float32),
    }
    if cin != cout:
        p["skip_w"], p["skip_b"] = _init_linear(ks[1], cin, cout)
    return p


def init_vae_params(key, input_channels, output_channels, num_io_res_blocks,
                    io_block_channels, model_channels, encoder_config,
                    decoder_config, use_skip_connections):
    keys = iter(jax.random.split(key, 128))
    params = {}
    params["input_layer"] = _init_linear(next(keys), input_channels, io_block_channels[0])

    in_blocks = []
    for chs, next_chs in zip(io_block_channels,
                             list(io_block_channels[1:]) + [model_channels]):
        for _ in range(num_io_res_blocks - 1):
            in_blocks.append((_init_resblock(next(keys), chs, chs),
                              {"down": False, "up": False}))
        in_blocks.append((_init_resblock(next(keys), chs, next_chs),
                          {"down": True, "up": False}))
    params["input_blocks"] = in_blocks

    # SLatEncoder: out_layer is zero-initialized -> mean = logvar = 0.
    params["enc_latent"] = encoder_config["latent_channels"]

    # SLatVoxelDecoder: backbone input projection + xavier-init out_layer.
    dm = decoder_config["model_channels"]
    dout = decoder_config["out_channels"]
    params["dec_in"] = _init_linear(next(keys), decoder_config["latent_channels"], dm)
    lim = (6.0 / (dm + dout)) ** 0.5
    params["dec_out"] = (
        jax.random.uniform(next(keys), (dm, dout), jnp.float32, -lim, lim),
        jnp.zeros((dout,), jnp.float32),
    )

    mult = 2 if use_skip_connections else 1
    rev = list(reversed(io_block_channels))
    prevs = [model_channels] + rev[1:]
    out_blocks = []
    for chs, prev_chs in zip(rev, prevs):
        out_blocks.append((_init_resblock(next(keys), prev_chs * mult, chs),
                           {"down": False, "up": True}))
        for _ in range(num_io_res_blocks - 1):
            out_blocks.append((_init_resblock(next(keys), chs * mult, chs),
                               {"down": False, "up": False}))
    params["output_blocks"] = out_blocks

    params["out_layer"] = _init_linear(next(keys), io_block_channels[0], output_channels)
    return params


# ------------------------------ VoxelGridVAE forward ------------------------

def voxel_grid_vae_forward(params, x, *, use_skip_connections, noise_key,
                           sample_posterior=True):
    B, D, H, W, C = x.shape

    # input_layer
    w, b = params["input_layer"]
    h = pallas_linear(x.reshape(-1, C), w, b).reshape(B, D, H, W, -1)

    # input blocks (collect skips)
    skips = []
    for p, flags in params["input_blocks"]:
        h = sparse_res_conv3d(h, p, downsample=flags["down"], upsample=flags["up"])
        skips.append(h)

    # ---- SLatEncoder ----
    # TODO(synk): SparseTransformerBase backbone not provided; its zero-init
    # out_layer gives mean = logvar = 0 exactly, so z = eps ~ N(0, I)
    # (torch.randn_like replaced by jax.random.normal).
    Bh, Dh, Hh, Wh, _ = h.shape
    n_lat = Bh * Dh * Hh * Wh
    latent_c = params["enc_latent"]
    if sample_posterior:
        z = jax.random.normal(noise_key, (n_lat, latent_c), jnp.float32)
    else:
        z = jnp.zeros((n_lat, latent_c), jnp.float32)

    # ---- SLatVoxelDecoder ----
    # TODO(synk): decoder transformer blocks not provided; backbone reduced to its
    # input projection.  With no nonlinearity between it and out_layer the two
    # linears are pre-composed and run as a single fused Pallas matmul.
    w_in, b_in = params["dec_in"]
    w_out, b_out = params["dec_out"]
    w_dec = (w_in @ w_out).astype(jnp.float32)
    b_dec = b_in @ w_out + b_out
    h = pallas_linear(z, w_dec, b_dec).reshape(Bh, Dh, Hh, Wh, -1)

    # output blocks (optional channel-concat skip connections; the concat fuses
    # into the padded-flat build consumed by the conv / skip kernel inputs)
    for (p, flags), skip in zip(params["output_blocks"], reversed(skips)):
        if use_skip_connections:
            h = jnp.concatenate([h, skip], axis=-1)
        h = sparse_res_conv3d(h, p, downsample=flags["down"], upsample=flags["up"])

    # final head: no-affine LayerNorm + out_layer linear + tanh fused in one kernel
    Cf = h.shape[-1]
    w, b = params["out_layer"]
    out = pallas_linear(h.reshape(-1, Cf), w, b, ln=True, ln_eps=1e-5, act="tanh")
    return out.reshape(B, D, H, W, -1)


# ------------------------------ main -----------------------------------------

if __name__ == "__main__":
    key = jax.random.PRNGKey(0)
    k_param, k_x, k_noise = jax.random.split(key, 3)

    # small synthetic config
    B, D, H, W = 2, 8, 8, 8
    input_channels, output_channels = 4, 4
    io_block_channels = [8]
    num_io_res_blocks = 2
    model_channels = 16
    use_skip_connections = True
    use_fp16 = False  # convert_to_fp16 is a no-op in the reference module
    encoder_config = dict(in_channels=model_channels, model_channels=32,
                          latent_channels=8, num_blocks=1, num_head_channels=8)
    decoder_config = dict(model_channels=32, out_channels=model_channels,
                          latent_channels=8, num_blocks=1, num_head_channels=8)

    params = init_vae_params(k_param, input_channels, output_channels,
                             num_io_res_blocks, io_block_channels, model_channels,
                             encoder_config, decoder_config, use_skip_connections)

    x = jax.random.normal(k_x, (B, D, H, W, input_channels), jnp.float32)

    out = voxel_grid_vae_forward(params, x,
                                 use_skip_connections=use_skip_connections,
                                 noise_key=k_noise)
    out = jax.block_until_ready(out)

    assert out.shape == (B, D, H, W, output_channels), out.shape
    assert bool(jnp.all(jnp.isfinite(out)))
    assert bool(jnp.all(jnp.abs(out) <= 1.0 + 1e-6))  # tanh range
    print("KERNEL_OK")
</pallas_src>

<mosaic_0001>
module attributes {stable_mosaic.version = 11 : i64} {
  func.func @_linear_kernel(%arg0: i32, %arg1: memref<512x4xf32, #tpu.memory_space<vmem>>, %arg2: memref<4x8xbf16, #tpu.memory_space<vmem>>, %arg3: memref<1x8xf32, #tpu.memory_space<vmem>>, %arg4: memref<512x8xf32, #tpu.memory_space<vmem>>) attributes {dimension_semantics = [#tpu.dimension_semantics<parallel>], iteration_bounds = array<i64: 2>, scalar_prefetch = 0 : i64, scratch_operands = 0 : i64, tpu.core_type = #tpu.core_type<tc>, window_params = [{transform_indices = @transform_0, window_bounds = array<i64: 512, 4>}, {pipeline_mode = #tpu.pipeline_mode<synchronous>, transform_indices = @transform_1, window_bounds = array<i64: 4, 8>}, {pipeline_mode = #tpu.pipeline_mode<synchronous>, transform_indices = @transform_2, window_bounds = array<i64: 1, 8>}, {transform_indices = @transform_3, window_bounds = array<i64: 512, 8>}]} {
    %c0 = arith.constant 0 : index
    %c0_0 = arith.constant 0 : index
    %0 = vector.load %arg1[%c0, %c0_0] : memref<512x4xf32, #tpu.memory_space<vmem>>, vector<512x4xf32>
    %1 = arith.truncf %0 : vector<512x4xf32> to vector<512x4xbf16>
    %c0_1 = arith.constant 0 : index
    %c0_2 = arith.constant 0 : index
    %2 = vector.load %arg2[%c0_1, %c0_2] : memref<4x8xbf16, #tpu.memory_space<vmem>>, vector<4x8xbf16>
    %cst = arith.constant dense<0.000000e+00> : vector<512x8xf32>
    %3 = tpu.matmul %1, %2, %cst {dimension_numbers = #tpu.dot_dimension_numbers<[1], [0], [0], [1], [0, 0, 1, 1], [], []>} : vector<512x4xbf16>, vector<4x8xbf16>, vector<512x8xf32> -> vector<512x8xf32>
    %c0_3 = arith.constant 0 : index
    %c0_4 = arith.constant 0 : index
    %4 = vector.load %arg3[%c0_3, %c0_4] : memref<1x8xf32, #tpu.memory_space<vmem>>, vector<1x8xf32>
    %5 = vector.broadcast %4 : vector<1x8xf32> to vector<512x8xf32>
    %6 = arith.addf %3, %5 : vector<512x8xf32>
    %c0_5 = arith.constant 0 : index
    %c0_6 = arith.constant 0 : index
    %7 = vector.load %arg4[%c0_5, %c0_6] : memref<512x8xf32, #tpu.memory_space<vmem>>, vector<512x8xf32>
    tpu.vector_store %arg4[%c0_5, %c0_6], %6 {strides = array<i32>} : memref<512x8xf32, #tpu.memory_space<vmem>>, vector<512x8xf32>,
    return
  }
  func.func @transform_0(%arg0: i32) -> (i32, i32) {
    %c0_i32 = arith.constant 0 : i32
    %c0_i32_0 = arith.constant 0 : i32
    return %arg0, %c0_i32 : i32, i32
  }
  func.func @transform_1(%arg0: i32) -> (i32, i32) {
    %c0_i32 = arith.constant 0 : i32
    %c0_i32_0 = arith.constant 0 : i32
    %c0_i32_1 = arith.constant 0 : i32
    return %c0_i32, %c0_i32_0 : i32, i32
  }
  func.func @transform_2(%arg0: i32) -> (i32, i32) {
    %c0_i32 = arith.constant 0 : i32
    %c0_i32_0 = arith.constant 0 : i32
    %c0_i32_1 = arith.constant 0 : i32
    return %c0_i32, %c0_i32_0 : i32, i32
  }
  func.func @transform_3(%arg0: i32) -> (i32, i32) {
    %c0_i32 = arith.constant 0 : i32
    %c0_i32_0 = arith.constant 0 : i32
    return %arg0, %c0_i32 : i32, i32
  }
}

</mosaic_0001>

<llo_original>
// kernel: tpu_custom_call.1
$region0: #{tpu_custom_call.1}
  #allocation0 [shape = 'u32[]', space=smem, size = 0x4, offset = 0x4, fixed_abs, tag = 'smem constant byte address 0x4 - core index']
  #allocation1 [shape = 'u32[72,128]{1,0:T(1,128)}', space=vmem, size = 0x9000, scoped, tag = 'internal scratch']
  %s0 = inlined_call_operand.vmem [shape: f32[1024,4], index: 0, kind: input, shape index: {}]
  %s1 = inlined_call_operand.vmem [shape: bf16[4,8], index: 1, kind: input, shape index: {}]
  %s2 = inlined_call_operand.vmem [shape: f32[1,8], index: 2, kind: input, shape index: {}]
  %s3 = inlined_call_operand.vmem [shape: f32[1024,8], index: 3, kind: output, shape index: {}]
  %s4 = sld [smem:[#allocation0]]
  $region45: #{tpu_custom_call.1} parent=0
    _
  %s6 = ssub.s32 1, %s4
  %s7 = scalar_select 0, %s6, %s4
  loop: start=0, step=1, limit=4
  $region2: #{tpu_custom_call.1} parent=0 // loop_pre_header
    _
  $region3: #{tpu_custom_call.1} parent=0 // loop_header
    %s9 = sphi 0, %s13
    %p10 = scmp.ge.s32.totalorder %s9, 4
    %s19 = sphi 0, %s21
    %s22 = sphi 0, %s19
    %s23 = sphi 0, %s22
    %s39 = sphi 0, %s23
    %s43 = sphi 0, %s43
    %s45 = sphi 0, %s43
    %s46 = sphi 0, %s45
    %s60 = sphi 0, %s46
    %s64 = sphi 0, %s64
    %s66 = sphi 0, %s64
    %s67 = sphi 0, %s66
    %s81 = sphi 0, %s67
    %s87 = sphi 0, %s89
    %s90 = sphi 0, %s87
    %s91 = sphi 0, %s90
    %s107 = sphi 0, %s91
  $region4: #{tpu_custom_call.1} parent=0 // loop_header_branch
    %12 = sbr.rel (%p10) target = $region8
  $region5: #{tpu_custom_call.1} parent=0 // loop_body
    %s14 = ssub.s32 %s9, 1
    %s15 = ssub.s32 %s9, 2
    %s16 = sadd.s32 %s9, 1
    %s17 = ssub.s32 %s9, %s16
    %p18 = scmp.eq.s32.totalorder %s17, 0
    %s20 = sadd.s32 %s19, 1
    %s21 = scalar_select %p18, %s19, %s20
    %p24 = pneg %p18
    %p25 = scmp.eq.s32.totalorder %s9, 1
    %p26 = por %p24, %p25
    %p27 = scmp.ne.s32.totalorder %s19, %s22
    %p28 = scmp.eq.s32.totalorder %s9, 0
    %p29 = por %p27, %p28
    %p30 = scmp.ne.s32.totalorder %s19, %s22
    %p31 = scmp.eq.s32.totalorder %s14, 1
    %p32 = por %p30, %p31
    %p33 = scmp.ne.s32.totalorder %s22, %s23
    %p34 = scmp.eq.s32.totalorder %s14, 0
    %p35 = por %p33, %p34
    %p36 = scmp.ne.s32.totalorder %s22, %s23
    %p37 = scmp.eq.s32.totalorder %s15, 1
    %p38 = por %p36, %p37
    %p40 = scmp.ne.s32.totalorder %s23, %s39
    %p41 = scmp.eq.s32.totalorder %s15, 0
    %p42 = por %p40, %p41
    %s44 = sadd.s32 %s43, 1
    %p47 = scmp.eq.s32.totalorder %s9, 1
    %p48 = scmp.ne.s32.totalorder %s43, %s45
    %p49 = scmp.eq.s32.totalorder %s9, 0
    %p50 = por %p48, %p49
    %p51 = scmp.ne.s32.totalorder %s43, %s45
    %p52 = scmp.eq.s32.totalorder %s14, 1
    %p53 = por %p51, %p52
    %p54 = scmp.ne.s32.totalorder %s45, %s46
    %p55 = scmp.eq.s32.totalorder %s14, 0
    %p56 = por %p54, %p55
    %p57 = scmp.ne.s32.totalorder %s45, %s46
    %p58 = scmp.eq.s32.totalorder %s15, 1
    %p59 = por %p57, %p58
    %p61 = scmp.ne.s32.totalorder %s46, %s60
    %p62 = scmp.eq.s32.totalorder %s15, 0
    %p63 = por %p61, %p62
    %s65 = sadd.s32 %s64, 1
    %p68 = scmp.eq.s32.totalorder %s9, 1
    %p69 = scmp.ne.s32.totalorder %s64, %s66
    %p70 = scmp.eq.s32.totalorder %s9, 0
    %p71 = por %p69, %p70
    %p72 = scmp.ne.s32.totalorder %s64, %s66
    %p73 = scmp.eq.s32.totalorder %s14, 1
    %p74 = por %p72, %p73
    %p75 = scmp.ne.s32.totalorder %s66, %s67
    %p76 = scmp.eq.s32.totalorder %s14, 0
    %p77 = por %p75, %p76
    %p78 = scmp.ne.s32.totalorder %s66, %s67
    %p79 = scmp.eq.s32.totalorder %s15, 1
    %p80 = por %p78, %p79
    %p82 = scmp.ne.s32.totalorder %s67, %s81
    %p83 = scmp.eq.s32.totalorder %s15, 0
    %p84 = por %p82, %p83
    %s85 = ssub.s32 %s9, %s16
    %p86 = scmp.eq.s32.totalorder %s85, 0
    %s88 = sadd.s32 %s87, 1
    %s89 = scalar_select %p86, %s87, %s88
    %p92 = pneg %p86
    %p93 = scmp.eq.s32.totalorder %s9, 1
    %p94 = por %p92, %p93
    %p95 = scmp.ne.s32.totalorder %s87, %s90
    %p96 = scmp.eq.s32.totalorder %s9, 0
    %p97 = por %p95, %p96
    %p98 = scmp.ne.s32.totalorder %s87, %s90
    %p99 = scmp.eq.s32.totalorder %s14, 1
    %p100 = por %p98, %p99
    %p101 = scmp.ne.s32.totalorder %s90, %s91
    %p102 = scmp.eq.s32.totalorder %s14, 0
    %p103 = por %p101, %p102
    %p104 = scmp.ne.s32.totalorder %s90, %s91
    %p105 = scmp.eq.s32.totalorder %s15, 1
    %p106 = por %p104, %p105
    %p108 = scmp.ne.s32.totalorder %s91, %s107
    %p109 = scmp.eq.s32.totalorder %s15, 0
    %p110 = por %p108, %p109
    %p111 = scmp.le.s32.totalorder 1, %s9
    %p112 = scmp.lt.s32.totalorder %s9, 3
    %p113 = pnand %p111, %p112
    %p114 = pneg %p113
    // Predicated region
    $region9: #{tpu_custom_call.1} parent=5 // pred_check
      _
    $region10: #{tpu_custom_call.1} parent=5 // pred_check_branch
      %116 = sbr.rel (%p113) target = $region12
    $region11: #{tpu_custom_call.1} parent=5 // pred_region
      %s117 = ssub.s32 %s9, 1
      // Predicated region
      $region13: #{tpu_custom_call.1} parent=11 // pred_check
        %p118 = pneg %p56
      $region14: #{tpu_custom_call.1} parent=11 // pred_check_branch
        %120 = sbr.rel (%p118) target = $region16
      $region15: #{tpu_custom_call.1} parent=11 // pred_region
        _
      $region16: #{tpu_custom_call.1} parent=11 // pred_fallthru
        _
      // Predicated region
      $region17: #{tpu_custom_call.1} parent=11 // pred_check
        %p121 = pneg %p77
      $region18: #{tpu_custom_call.1} parent=11 // pred_check_branch
        %123 = sbr.rel (%p121) target = $region20
      $region19: #{tpu_custom_call.1} parent=11 // pred_region
        _
      $region20: #{tpu_custom_call.1} parent=11 // pred_fallthru
        _
    $region12: #{tpu_custom_call.1} parent=5 // pred_fallthru
      _
    %p124 = scmp.lt.s32.totalorder %s9, 2
    // Predicated region
    $region21: #{tpu_custom_call.1} parent=5 // pred_check
      %p125 = pneg %p124
    $region22: #{tpu_custom_call.1} parent=5 // pred_check_branch
      %127 = sbr.rel (%p125) target = $region24
    $region23: #{tpu_custom_call.1} parent=5 // pred_region
      // Predicated region
      $region25: #{tpu_custom_call.1} parent=23 // pred_check
        %p128 = pneg %p29
      $region26: #{tpu_custom_call.1} parent=23 // pred_check_branch
        %130 = sbr.rel (%p128) target = $region28
      $region27: #{tpu_custom_call.1} parent=23 // pred_region
        %s131 = smul.u32 64, %s9
        %p132 = scmp.lt.s32.totalorder %s131, 127
        %s133 = scalar_select %p132, %s131, 127
        %s134 = smul.addr %s133, 8
        %s135 = scalar_lea.vmem %s0, %s134
        %s136 = smul.u32 64, %s9
      $region28: #{tpu_custom_call.1} parent=23 // pred_fallthru
        _
    $region24: #{tpu_custom_call.1} parent=5 // pred_fallthru
      _
    %p137 = scmp.le.s32.totalorder 1, %s9
    %p138 = scmp.lt.s32.totalorder %s9, 3
    %p139 = pnand %p137, %p138
    %p140 = pneg %p139
    // Predicated region
    $region29: #{tpu_custom_call.1} parent=5 // pred_check
      _
    $region30: #{tpu_custom_call.1} parent=5 // pred_check_branch
      %142 = sbr.rel (%p139) target = $region32
    $region31: #{tpu_custom_call.1} parent=5 // pred_region
      %s143 = ssub.s32 %s9, 1
      %s144 = smul.u32 64, %s14
      %p145 = scmp.lt.s32.totalorder %s144, 127
      %s146 = scalar_select %p145, %s144, 127
      %s147 = smul.addr %s146, 8
      %s148 = scalar_lea.vmem %s0, %s147
      %p149 = pneg %p35
      %p150 = pneg %p32
      %p151 = pneg %p56
      %p152 = pneg %p53
      %p153 = pneg %p77
      %p154 = pneg %p74
      %p155 = pneg %p103
      %p156 = pneg %p100
      %s157 = smul.u32 64, %s14
      %p158 = scmp.lt.s32.totalorder %s157, 127
      %s159 = scalar_select %p158, %s157, 127
      %s160 = smul.addr %s159, 8
      %s161 = scalar_lea.vmem %s3, %s160
      %s162 = smul.u32 64, %s14
      %p163 = scmp.lt.s32.totalorder %s162, 127
      %s164 = scalar_select %p163, %s162, 127
      %s165 = smul.addr %s164, 8
      %s166 = scalar_lea.vmem %s0, %s165
      %s167 = smul.u32 64, %s14
      %s168 = smul.u32 64, %s14
      %p169 = scmp.lt.s32.totalorder %s168, 127
      %s170 = scalar_select %p169, %s168, 127
      %s171 = smul.addr %s170, 8
      %s172 = scalar_lea.vmem %s3, %s171
      %s173 = smul.u32 64, %s14
      %v175 = vld [vmem:[%s166] sm:$0xff]
      %v176 = vld [vmem:[%s166 + $0x8] sm:$0xff]
      %v177 = vld [vmem:[%s166 + $0x10] sm:$0xff]
      %v178 = vld [vmem:[%s166 + $0x18] sm:$0xff]
      %v179 = vld [vmem:[%s166 + $0x20] sm:$0xff]
      %v180 = vld [vmem:[%s166 + $0x28] sm:$0xff]
      %v181 = vld [vmem:[%s166 + $0x30] sm:$0xff]
      %v182 = vld [vmem:[%s166 + $0x38] sm:$0xff]
      %v183 = vld [vmem:[%s166 + $0x40] sm:$0xff]
      %v184 = vld [vmem:[%s166 + $0x48] sm:$0xff]
      %v185 = vld [vmem:[%s166 + $0x50] sm:$0xff]
      %v186 = vld [vmem:[%s166 + $0x58] sm:$0xff]
      %v187 = vld [vmem:[%s166 + $0x60] sm:$0xff]
      %v188 = vld [vmem:[%s166 + $0x68] sm:$0xff]
      %v189 = vld [vmem:[%s166 + $0x70] sm:$0xff]
      %v190 = vld [vmem:[%s166 + $0x78] sm:$0xff]
      %v191 = vld [vmem:[%s166 + $0x80] sm:$0xff]
      %v192 = vld [vmem:[%s166 + $0x88] sm:$0xff]
      %v193 = vld [vmem:[%s166 + $0x90] sm:$0xff]
      %v194 = vld [vmem:[%s166 + $0x98] sm:$0xff]
      %v195 = vld [vmem:[%s166 + $0xa0] sm:$0xff]
      %v196 = vld [vmem:[%s166 + $0xa8] sm:$0xff]
      %v197 = vld [vmem:[%s166 + $0xb0] sm:$0xff]
      %v198 = vld [vmem:[%s166 + $0xb8] sm:$0xff]
      %v199 = vld [vmem:[%s166 + $0xc0] sm:$0xff]
      %v200 = vld [vmem:[%s166 + $0xc8] sm:$0xff]
      %v201 = vld [vmem:[%s166 + $0xd0] sm:$0xff]
      %v202 = vld [vmem:[%s166 + $0xd8] sm:$0xff]
      %v203 = vld [vmem:[%s166 + $0xe0] sm:$0xff]
      %v204 = vld [vmem:[%s166 + $0xe8] sm:$0xff]
      %v205 = vld [vmem:[%s166 + $0xf0] sm:$0xff]
      %v206 = vld [vmem:[%s166 + $0xf8] sm:$0xff]
      %v207 = vld [vmem:[%s166 + $0x100] sm:$0xff]
      %v208 = vld [vmem:[%s166 + $0x108] sm:$0xff]
      %v209 = vld [vmem:[%s166 + $0x110] sm:$0xff]
      %v210 = vld [vmem:[%s166 + $0x118] sm:$0xff]
      %v211 = vld [vmem:[%s166 + $0x120] sm:$0xff]
      %v212 = vld [vmem:[%s166 + $0x128] sm:$0xff]
      %v213 = vld [vmem:[%s166 + $0x130] sm:$0xff]
      %v214 = vld [vmem:[%s166 + $0x138] sm:$0xff]
      %v215 = vld [vmem:[%s166 + $0x140] sm:$0xff]
      %v216 = vld [vmem:[%s166 + $0x148] sm:$0xff]
      %v217 = vld [vmem:[%s166 + $0x150] sm:$0xff]
      %v218 = vld [vmem:[%s166 + $0x158] sm:$0xff]
      %v219 = vld [vmem:[%s166 + $0x160] sm:$0xff]
      %v220 = vld [vmem:[%s166 + $0x168] sm:$0xff]
      %v221 = vld [vmem:[%s166 + $0x170] sm:$0xff]
      %v222 = vld [vmem:[%s166 + $0x178] sm:$0xff]
      %v223 = vld [vmem:[%s166 + $0x180] sm:$0xff]
      %v224 = vld [vmem:[%s166 + $0x188] sm:$0xff]
      %v225 = vld [vmem:[%s166 + $0x190] sm:$0xff]
      %v226 = vld [vmem:[%s166 + $0x198] sm:$0xff]
      %v227 = vld [vmem:[%s166 + $0x1a0] sm:$0xff]
      %v228 = vld [vmem:[%s166 + $0x1a8] sm:$0xff]
      %v229 = vld [vmem:[%s166 + $0x1b0] sm:$0xff]
      %v230 = vld [vmem:[%s166 + $0x1b8] sm:$0xff]
      %v231 = vld [vmem:[%s166 + $0x1c0] sm:$0xff]
      %v232 = vld [vmem:[%s166 + $0x1c8] sm:$0xff]
      %v233 = vld [vmem:[%s166 + $0x1d0] sm:$0xff]
      %v234 = vld [vmem:[%s166 + $0x1d8] sm:$0xff]
      %v235 = vld [vmem:[%s166 + $0x1e0] sm:$0xff]
      %v236 = vld [vmem:[%s166 + $0x1e8] sm:$0xff]
      %v237 = vld [vmem:[%s166 + $0x1f0] sm:$0xff]
      %v238 = vld [vmem:[%s166 + $0x1f8] sm:$0xff]
      %v239 = vpack.c.bf16 %v176, %v175
      %v240 = vpack.c.bf16 %v178, %v177
      %v241 = vpack.c.bf16 %v180, %v179
      %v242 = vpack.c.bf16 %v182, %v181
      %v243 = vpack.c.bf16 %v184, %v183
      %v244 = vpack.c.bf16 %v186, %v185
      %v245 = vpack.c.bf16 %v188, %v187
      %v246 = vpack.c.bf16 %v190, %v189
      %v247 = vpack.c.bf16 %v192, %v191
      %v248 = vpack.c.bf16 %v194, %v193
      %v249 = vpack.c.bf16 %v196, %v195
      %v250 = vpack.c.bf16 %v198, %v197
      %v251 = vpack.c.bf16 %v200, %v199
      %v252 = vpack.c.bf16 %v202, %v201
      %v253 = vpack.c.bf16 %v204, %v203
      %v254 = vpack.c.bf16 %v206, %v205
      %v255 = vpack.c.bf16 %v208, %v207
      %v256 = vpack.c.bf16 %v210, %v209
      %v257 = vpack.c.bf16 %v212, %v211
      %v258 = vpack.c.bf16 %v214, %v213
      %v259 = vpack.c.bf16 %v216, %v215
      %v260 = vpack.c.bf16 %v218, %v217
      %v261 = vpack.c.bf16 %v220, %v219
      %v262 = vpack.c.bf16 %v222, %v221
      %v263 = vpack.c.bf16 %v224, %v223
      %v264 = vpack.c.bf16 %v226, %v225
      %v265 = vpack.c.bf16 %v228, %v227
      %v266 = vpack.c.bf16 %v230, %v229
      %v267 = vpack.c.bf16 %v232, %v231
      %v268 = vpack.c.bf16 %v234, %v233
      %v269 = vpack.c.bf16 %v236, %v235
      %v270 = vpack.c.bf16 %v238, %v237
      %v271 = vld [vmem:[%s1] sm:$0x3]
      %v272 = vld [vmem:[%s2] sm:$0x1]
      %v274 = vperm.slane %v272, 0
      %vm276 = vcmask 31744
      %v278 = vsel %vm276, %v239, 0
      %v281 = vsel %vm276, %v240, 0
      %v284 = vsel %vm276, %v241, 0
      %v287 = vsel %vm276, %v242, 0
      %v290 = vsel %vm276, %v243, 0
      %v293 = vsel %vm276, %v244, 0
      %v296 = vsel %vm276, %v245, 0
      %v299 = vsel %vm276, %v246, 0
      %v302 = vsel %vm276, %v247, 0
      %v305 = vsel %vm276, %v248, 0
      %v308 = vsel %vm276, %v249, 0
      %v311 = vsel %vm276, %v250, 0
      %v314 = vsel %vm276, %v251, 0
      %v317 = vsel %vm276, %v252, 0
      %v320 = vsel %vm276, %v253, 0
      %v323 = vsel %vm276, %v254, 0
      %v326 = vsel %vm276, %v255, 0
      %v329 = vsel %vm276, %v256, 0
      %v332 = vsel %vm276, %v257, 0
      %v335 = vsel %vm276, %v258, 0
      %v338 = vsel %vm276, %v259, 0
      %v341 = vsel %vm276, %v260, 0
      %v344 = vsel %vm276, %v261, 0
      %v347 = vsel %vm276, %v262, 0
      %v350 = vsel %vm276, %v263, 0
      %v353 = vsel %vm276, %v264, 0
      %v356 = vsel %vm276, %v265, 0
      %v359 = vsel %vm276, %v266, 0
      %v362 = vsel %vm276, %v267, 0
      %v365 = vsel %vm276, %v268, 0
      %v368 = vsel %vm276, %v269, 0
      %v371 = vsel %vm276, %v270, 0
      %vm373 = vcmask 1041408
      %v375 = vsel %vm373, %v271, 0
      %377 = vmatpush.bf16.msra.mxu0 0
      %378 = vmatpush.bf16.msra.mxu0 0
      %379 = vmatpush.bf16.msra.mxu0 0
      %380 = vmatpush.bf16.msra.mxu0 0
      %381 = vmatpush.bf16.msra.mxu0 0
      %382 = vmatpush.bf16.msra.mxu0 0
      %383 = vmatpush.bf16.msra.mxu0 0
      %384 = vmatpush.bf16.msra.mxu0 %v375
      %385 = vmatmul.bf16.gmra.mxu0 %v278
      %v386 = vpop.f32.mrf.mxu0
      %v387 = vadd.f32 %v274, %v386
      %v388 = vpop.f32.mrf.mxu0
      %v389 = vadd.f32 %v274, %v388
      %390 = vmatmul.bf16.gmra.mxu0 %v281
      %v391 = vpop.f32.mrf.mxu0
      %v392 = vadd.f32 %v274, %v391
      %v393 = vpop.f32.mrf.mxu0
      %v394 = vadd.f32 %v274, %v393
      %395 = vmatmul.bf16.gmra.mxu0 %v284
      %v396 = vpop.f32.mrf.mxu0
      %v397 = vadd.f32 %v274, %v396
      %v398 = vpop.f32.mrf.mxu0
      %v399 = vadd.f32 %v274, %v398
      %400 = vmatmul.bf16.gmra.mxu0 %v287
      %v401 = vpop.f32.mrf.mxu0
      %v402 = vadd.f32 %v274, %v401
      %v403 = vpop.f32.mrf.mxu0
      %v404 = vadd.f32 %v274, %v403
      %405 = vmatmul.bf16.gmra.mxu0 %v290
      %v406 = vpop.f32.mrf.mxu0
      %v407 = vadd.f32 %v274, %v406
      %v408 = vpop.f32.mrf.mxu0
      %v409 = vadd.f32 %v274, %v408
      %410 = vmatmul.bf16.gmra.mxu0 %v293
      %v411 = vpop.f32.mrf.mxu0
      %v412 = vadd.f32 %v274, %v411
      %v413 = vpop.f32.mrf.mxu0
      %v414 = vadd.f32 %v274, %v413
      %415 = vmatmul.bf16.gmra.mxu0 %v296
      %v416 = vpop.f32.mrf.mxu0
      %v417 = vadd.f32 %v274, %v416
      %v418 = vpop.f32.mrf.mxu0
      %v419 = vadd.f32 %v274, %v418
      %420 = vmatmul.bf16.gmra.mxu0 %v299
      %v421 = vpop.f32.mrf.mxu0
      %v422 = vadd.f32 %v274, %v421
      %v423 = vpop.f32.mrf.mxu0
      %v424 = vadd.f32 %v274, %v423
      %425 = vmatmul.bf16.gmra.mxu0 %v302
      %v426 = vpop.f32.mrf.mxu0
      %v427 = vadd.f32 %v274, %v426
      %v428 = vpop.f32.mrf.mxu0
      %v429 = vadd.f32 %v274, %v428
      %430 = vmatmul.bf16.gmra.mxu0 %v305
      %v431 = vpop.f32.mrf.mxu0
      %v432 = vadd.f32 %v274, %v431
      %v433 = vpop.f32.mrf.mxu0
      %v434 = vadd.f32 %v274, %v433
      %435 = vmatmul.bf16.gmra.mxu0 %v308
      %v436 = vpop.f32.mrf.mxu0
      %v437 = vadd.f32 %v274, %v436
      %v438 = vpop.f32.mrf.mxu0
      %v439 = vadd.f32 %v274, %v438
      %440 = vmatmul.bf16.gmra.mxu0 %v311
      %v441 = vpop.f32.mrf.mxu0
      %v442 = vadd.f32 %v274, %v441
      %v443 = vpop.f32.mrf.mxu0
      %v444 = vadd.f32 %v274, %v443
      %445 = vmatmul.bf16.gmra.mxu0 %v314
      %v446 = vpop.f32.mrf.mxu0
      %v447 = vadd.f32 %v274, %v446
      %v448 = vpop.f32.mrf.mxu0
      %v449 = vadd.f32 %v274, %v448
      %450 = vmatmul.bf16.gmra.mxu0 %v317
      %v451 = vpop.f32.mrf.mxu0
      %v452 = vadd.f32 %v274, %v451
      %v453 = vpop.f32.mrf.mxu0
      %v454 = vadd.f32 %v274, %v453
      %455 = vmatmul.bf16.gmra.mxu0 %v320
      %v456 = vpop.f32.mrf.mxu0
      %v457 = vadd.f32 %v274, %v456
      %v458 = vpop.f32.mrf.mxu0
      %v459 = vadd.f32 %v274, %v458
      %460 = vmatmul.bf16.gmra.mxu0 %v323
      %v461 = vpop.f32.mrf.mxu0
      %v462 = vadd.f32 %v274, %v461
      %v463 = vpop.f32.mrf.mxu0
      %v464 = vadd.f32 %v274, %v463
      %465 = vmatmul.bf16.gmra.mxu0 %v326
      %v466 = vpop.f32.mrf.mxu0
      %v467 = vadd.f32 %v274, %v466
      %v468 = vpop.f32.mrf.mxu0
      %v469 = vadd.f32 %v274, %v468
      %470 = vmatmul.bf16.gmra.mxu0 %v329
      %v471 = vpop.f32.mrf.mxu0
      %v472 = vadd.f32 %v274, %v471
      %v473 = vpop.f32.mrf.mxu0
      %v474 = vadd.f32 %v274, %v473
      %475 = vmatmul.bf16.gmra.mxu0 %v332
      %v476 = vpop.f32.mrf.mxu0
      %v477 = vadd.f32 %v274, %v476
      %v478 = vpop.f32.mrf.mxu0
      %v479 = vadd.f32 %v274, %v478
      %480 = vmatmul.bf16.gmra.mxu0 %v335
      %v481 = vpop.f32.mrf.mxu0
      %v482 = vadd.f32 %v274, %v481
      %v483 = vpop.f32.mrf.mxu0
      %v484 = vadd.f32 %v274, %v483
      %485 = vmatmul.bf16.gmra.mxu0 %v338
      %v486 = vpop.f32.mrf.mxu0
      %v487 = vadd.f32 %v274, %v486
      %v488 = vpop.f32.mrf.mxu0
      %v489 = vadd.f32 %v274, %v488
      %490 = vmatmul.bf16.gmra.mxu0 %v341
      %v491 = vpop.f32.mrf.mxu0
      %v492 = vadd.f32 %v274, %v491
      %v493 = vpop.f32.mrf.mxu0
      %v494 = vadd.f32 %v274, %v493
      %495 = vmatmul.bf16.gmra.mxu0 %v344
      %v496 = vpop.f32.mrf.mxu0
      %v497 = vadd.f32 %v274, %v496
      %v498 = vpop.f32.mrf.mxu0
      %v499 = vadd.f32 %v274, %v498
      %500 = vmatmul.bf16.gmra.mxu0 %v347
      %v501 = vpop.f32.mrf.mxu0
      %v502 = vadd.f32 %v274, %v501
      %v503 = vpop.f32.mrf.mxu0
      %v504 = vadd.f32 %v274, %v503
      %505 = vmatmul.bf16.gmra.mxu0 %v350
      %v506 = vpop.f32.mrf.mxu0
      %v507 = vadd.f32 %v274, %v506
      %v508 = vpop.f32.mrf.mxu0
      %v509 = vadd.f32 %v274, %v508
      %510 = vmatmul.bf16.gmra.mxu0 %v353
      %v511 = vpop.f32.mrf.mxu0
      %v512 = vadd.f32 %v274, %v511
      %v513 = vpop.f32.mrf.mxu0
      %v514 = vadd.f32 %v274, %v513
      %515 = vmatmul.bf16.gmra.mxu0 %v356
      %v516 = vpop.f32.mrf.mxu0
      %v517 = vadd.f32 %v274, %v516
      %v518 = vpop.f32.mrf.mxu0
      %v519 = vadd.f32 %v274, %v518
      %520 = vmatmul.bf16.gmra.mxu0 %v359
      %v521 = vpop.f32.mrf.mxu0
      %v522 = vadd.f32 %v274, %v521
      %v523 = vpop.f32.mrf.mxu0
      %v524 = vadd.f32 %v274, %v523
      %525 = vmatmul.bf16.gmra.mxu0 %v362
      %v526 = vpop.f32.mrf.mxu0
      %v527 = vadd.f32 %v274, %v526
      %v528 = vpop.f32.mrf.mxu0
      %v529 = vadd.f32 %v274, %v528
      %530 = vmatmul.bf16.gmra.mxu0 %v365
      %v531 = vpop.f32.mrf.mxu0
      %v532 = vadd.f32 %v274, %v531
      %v533 = vpop.f32.mrf.mxu0
      %v534 = vadd.f32 %v274, %v533
      %535 = vmatmul.bf16.gmra.mxu0 %v368
      %v536 = vpop.f32.mrf.mxu0
      %v537 = vadd.f32 %v274, %v536
      %v538 = vpop.f32.mrf.mxu0
      %v539 = vadd.f32 %v274, %v538
      %540 = vmatmul.bf16.gmra.mxu0 %v371
      %v541 = vpop.f32.mrf.mxu0
      %v542 = vadd.f32 %v274, %v541
      %v543 = vpop.f32.mrf.mxu0
      %v544 = vadd.f32 %v274, %v543
      %545 = vdwg.mxu0
      %vm546 = vcmask 64512
      %547 = vst.msk [vmem:[%s172] sm:$0xff] %vm546, %v387
      %548 = vst.msk [vmem:[%s172 + $0x8] sm:$0xff] %vm546, %v389
      %549 = vst.msk [vmem:[%s172 + $0x10] sm:$0xff] %vm546, %v392
      %550 = vst.msk [vmem:[%s172 + $0x18] sm:$0xff] %vm546, %v394
      %551 = vst.msk [vmem:[%s172 + $0x20] sm:$0xff] %vm546, %v397
      %552 = vst.msk [vmem:[%s172 + $0x28] sm:$0xff] %vm546, %v399
      %553 = vst.msk [vmem:[%s172 + $0x30] sm:$0xff] %vm546, %v402
      %554 = vst.msk [vmem:[%s172 + $0x38] sm:$0xff] %vm546, %v404
      %555 = vst.msk [vmem:[%s172 + $0x40] sm:$0xff] %vm546, %v407
      %556 = vst.msk [vmem:[%s172 + $0x48] sm:$0xff] %vm546, %v409
      %557 = vst.msk [vmem:[%s172 + $0x50] sm:$0xff] %vm546, %v412
      %558 = vst.msk [vmem:[%s172 + $0x58] sm:$0xff] %vm546, %v414
      %559 = vst.msk [vmem:[%s172 + $0x60] sm:$0xff] %vm546, %v417
      %560 = vst.msk [vmem:[%s172 + $0x68] sm:$0xff] %vm546, %v419
      %561 = vst.msk [vmem:[%s172 + $0x70] sm:$0xff] %vm546, %v422
      %562 = vst.msk [vmem:[%s172 + $0x78] sm:$0xff] %vm546, %v424
      %563 = vst.msk [vmem:[%s172 + $0x80] sm:$0xff] %vm546, %v427
      %564 = vst.msk [vmem:[%s172 + $0x88] sm:$0xff] %vm546, %v429
      %565 = vst.msk [vmem:[%s172 + $0x90] sm:$0xff] %vm546, %v432
      %566 = vst.msk [vmem:[%s172 + $0x98] sm:$0xff] %vm546, %v434
      %567 = vst.msk [vmem:[%s172 + $0xa0] sm:$0xff] %vm546, %v437
      %568 = vst.msk [vmem:[%s172 + $0xa8] sm:$0xff] %vm546, %v439
      %569 = vst.msk [vmem:[%s172 + $0xb0] sm:$0xff] %vm546, %v442
      %570 = vst.msk [vmem:[%s172 + $0xb8] sm:$0xff] %vm546, %v444
      %571 = vst.msk [vmem:[%s172 + $0xc0] sm:$0xff] %vm546, %v447
      %572 = vst.msk [vmem:[%s172 + $0xc8] sm:$0xff] %vm546, %v449
      %573 = vst.msk [vmem:[%s172 + $0xd0] sm:$0xff] %vm546, %v452
      %574 = vst.msk [vmem:[%s172 + $0xd8] sm:$0xff] %vm546, %v454
      %575 = vst.msk [vmem:[%s172 + $0xe0] sm:$0xff] %vm546, %v457
      %576 = vst.msk [vmem:[%s172 + $0xe8] sm:$0xff] %vm546, %v459
      %577 = vst.msk [vmem:[%s172 + $0xf0] sm:$0xff] %vm546, %v462
      %578 = vst.msk [vmem:[%s172 + $0xf8] sm:$0xff] %vm546, %v464
      %579 = vst.msk [vmem:[%s172 + $0x100] sm:$0xff] %vm546, %v467
      %580 = vst.msk [vmem:[%s172 + $0x108] sm:$0xff] %vm546, %v469
      %581 = vst.msk [vmem:[%s172 + $0x110] sm:$0xff] %vm546, %v472
      %582 = vst.msk [vmem:[%s172 + $0x118] sm:$0xff] %vm546, %v474
      %583 = vst.msk [vmem:[%s172 + $0x120] sm:$0xff] %vm546, %v477
      %584 = vst.msk [vmem:[%s172 + $0x128] sm:$0xff] %vm546, %v479
      %585 = vst.msk [vmem:[%s172 + $0x130] sm:$0xff] %vm546, %v482
      %586 = vst.msk [vmem:[%s172 + $0x138] sm:$0xff] %vm546, %v484
      %587 = vst.msk [vmem:[%s172 + $0x140] sm:$0xff] %vm546, %v487
      %588 = vst.msk [vmem:[%s172 + $0x148] sm:$0xff] %vm546, %v489
      %589 = vst.msk [vmem:[%s172 + $0x150] sm:$0xff] %vm546, %v492
      %590 = vst.msk [vmem:[%s172 + $0x158] sm:$0xff] %vm546, %v494
      %591 = vst.msk [vmem:[%s172 + $0x160] sm:$0xff] %vm546, %v497
      %592 = vst.msk [vmem:[%s172 + $0x168] sm:$0xff] %vm546, %v499
      %593 = vst.msk [vmem:[%s172 + $0x170] sm:$0xff] %vm546, %v502
      %594 = vst.msk [vmem:[%s172 + $0x178] sm:$0xff] %vm546, %v504
      %595 = vst.msk [vmem:[%s172 + $0x180] sm:$0xff] %vm546, %v507
      %596 = vst.msk [vmem:[%s172 + $0x188] sm:$0xff] %vm546, %v509
      %597 = vst.msk [vmem:[%s172 + $0x190] sm:$0xff] %vm546, %v512
      %598 = vst.msk [vmem:[%s172 + $0x198] sm:$0xff] %vm546, %v514
      %599 = vst.msk [vmem:[%s172 + $0x1a0] sm:$0xff] %vm546, %v517
      %600 = vst.msk [vmem:[%s172 + $0x1a8] sm:$0xff] %vm546, %v519
      %601 = vst.msk [vmem:[%s172 + $0x1b0] sm:$0xff] %vm546, %v522
      %602 = vst.msk [vmem:[%s172 + $0x1b8] sm:$0xff] %vm546, %v524
      %603 = vst.msk [vmem:[%s172 + $0x1c0] sm:$0xff] %vm546, %v527
      %604 = vst.msk [vmem:[%s172 + $0x1c8] sm:$0xff] %vm546, %v529
      %605 = vst.msk [vmem:[%s172 + $0x1d0] sm:$0xff] %vm546, %v532
      %606 = vst.msk [vmem:[%s172 + $0x1d8] sm:$0xff] %vm546, %v534
      %607 = vst.msk [vmem:[%s172 + $0x1e0] sm:$0xff] %vm546, %v537
      %608 = vst.msk [vmem:[%s172 + $0x1e8] sm:$0xff] %vm546, %v539
      %609 = vst.msk [vmem:[%s172 + $0x1f0] sm:$0xff] %vm546, %v542
      %610 = vst.msk [vmem:[%s172 + $0x1f8] sm:$0xff] %vm546, %v544
      %s611 = smul.u32 64, %s14
      %p612 = scmp.lt.s32.totalorder %s611, 127
      %s613 = scalar_select %p612, %s611, 127
      %s614 = smul.addr %s613, 8
      %s615 = scalar_lea.vmem %s3, %s614
      // Predicated region
      $region33: #{tpu_custom_call.1} parent=31 // pred_check
        %p616 = pneg %p100
      $region34: #{tpu_custom_call.1} parent=31 // pred_check_branch
        %618 = sbr.rel (%p616) target = $region36
      $region35: #{tpu_custom_call.1} parent=31 // pred_region
        %s619 = smul.u32 64, %s14
      $region36: #{tpu_custom_call.1} parent=31 // pred_fallthru
        _
    $region32: #{tpu_custom_call.1} parent=5 // pred_fallthru
      _
    %p620 = scmp.le.s32.totalorder 2, %s9
    // Predicated region
    $region37: #{tpu_custom_call.1} parent=5 // pred_check
      %p621 = pneg %p620
    $region38: #{tpu_custom_call.1} parent=5 // pred_check_branch
      %623 = sbr.rel (%p621) target = $region40
    $region39: #{tpu_custom_call.1} parent=5 // pred_region
      %s624 = ssub.s32 %s9, 2
      // Predicated region
      $region41: #{tpu_custom_call.1} parent=39 // pred_check
        %p625 = pneg %p106
      $region42: #{tpu_custom_call.1} parent=39 // pred_check_branch
        %627 = sbr.rel (%p625) target = $region44
      $region43: #{tpu_custom_call.1} parent=39 // pred_region
        %s628 = smul.u32 64, %s15
        %p629 = scmp.lt.s32.totalorder %s628, 127
        %s630 = scalar_select %p629, %s628, 127
        %s631 = smul.addr %s630, 8
        %s632 = scalar_lea.vmem %s3, %s631
      $region44: #{tpu_custom_call.1} parent=39 // pred_fallthru
        _
    $region40: #{tpu_custom_call.1} parent=5 // pred_fallthru
      _
  $region6: #{tpu_custom_call.1} parent=0 // loop_footer
    %s13 = sadd.s32 1, %s9
  $region7: #{tpu_custom_call.1} parent=0 // loop_footer_branch
    %8 = sbr.rel target = $region3
  $region8: #{tpu_custom_call.1} parent=0 // loop_exit
    _

</llo_original>
